<compile_context>
chip_gen: v5e
topology: v5e:2x2
jax: 0.10.0
libtpu: 0.0.40
codegen_flags: <defaults>
</compile_context>

<pallas_src>
import jax
import jax.numpy as jnp
from jax.experimental import pallas as pl
from jax.experimental.pallas import tpu as pltpu


# ----------------------------------------------------------------------------
# Fused kernel: GCN(seq1), GCN(seq2) sharing one adj matmul -> AvgReadout ->
# sigmoid -> Bilinear discriminator -> (1, 2N) logits.
# ----------------------------------------------------------------------------
def _dgi_fused_kernel(alpha_ref, bbias_ref, seq_ref, adj_ref, w_ref, b_ref,
                      wb_ref, out_ref):
    N = adj_ref.shape[0]
    n_h = wb_ref.shape[0]

    alpha = alpha_ref[0]        # PReLU weight (SMEM scalar)
    bil_bias = bbias_ref[0]     # bilinear bias (SMEM scalar)

    adj = adj_ref[...]          # (N, N)        f32 or bf16 (MXU operand)
    w = w_ref[...]              # (n_in, n_h)   f32 or bf16 (MXU operand)
    seq = seq_ref[...]          # (2N, n_in)    f32 or bf16 (MXU operand)

    # Input projection for both corruptions in one MXU pass (f32 accumulation).
    xw = jnp.dot(seq, w, preferred_element_type=jnp.float32)          # (2N, n_h)

    # Merge the two corruptions along lanes (cheap lane-side copy) so the
    # adjacency aggregation is a single 2*n_h-wide MXU pass over adj.
    xw_cols = jnp.concatenate([xw[:N, :], xw[N:, :]], axis=1)         # (N, 2*n_h)

    ax = jnp.dot(adj, xw_cols.astype(adj.dtype),
                 preferred_element_type=jnp.float32) + b_ref[...]     # (N, 2*n_h)

    # PReLU, lane-dense on the merged block (f32 on the VPU).
    h = jnp.where(ax > 0, ax, alpha * ax)                             # (N, 2*n_h)
    h1 = h[:, :n_h]                                                   # (N, n_h)
    h2 = h[:, n_h:]                                                   # (N, n_h)

    # AvgReadout + sigmoid: cross-sublane (XLU) sum — off the MXU critical path.
    c = jax.nn.sigmoid(jnp.sum(h1, axis=0, keepdims=True) * (1.0 / N))  # (1, n_h)

    # Bilinear discriminator: wc[0, i] = sum_j W_bil[i, j] * c[0, j]
    wc_row = jax.lax.dot_general(
        c, wb_ref[...], (((1,), (1,)), ((), ())),
        preferred_element_type=jnp.float32)                           # (1, n_h)

    # Two direct (1, N) score rows -> two full-lane-tile unmasked stores.
    sc1 = jax.lax.dot_general(
        wc_row, h1, (((1,), (1,)), ((), ())),
        preferred_element_type=jnp.float32)                           # (1, N)
    sc2 = jax.lax.dot_general(
        wc_row, h2, (((1,), (1,)), ((), ())),
        preferred_element_type=jnp.float32)                           # (1, N)

    out_ref[:, :N] = sc1 + bil_bias
    out_ref[:, N:] = sc2 + bil_bias


def dgi_fused_call(alpha, b_bil, seq_stacked, adj, w_even, b_merged, w_bil,
                   *, vmem_limit_bytes):
    N = adj.shape[0]
    return pl.pallas_call(
        _dgi_fused_kernel,
        out_shape=jax.ShapeDtypeStruct((1, 2 * N), jnp.float32),
        in_specs=[
            pl.BlockSpec(memory_space=pltpu.MemorySpace.SMEM),   # PReLU alpha
            pl.BlockSpec(memory_space=pltpu.MemorySpace.SMEM),   # bilinear bias
            pl.BlockSpec(memory_space=pltpu.MemorySpace.VMEM),   # seq   (2N, n_in)
            pl.BlockSpec(memory_space=pltpu.MemorySpace.VMEM),   # adj   (N, N)
            pl.BlockSpec(memory_space=pltpu.MemorySpace.VMEM),   # w     (n_in, n_h)
            pl.BlockSpec(memory_space=pltpu.MemorySpace.VMEM),   # bias  (1, 2*n_h)
            pl.BlockSpec(memory_space=pltpu.MemorySpace.VMEM),   # w_bil (n_h, n_h)
        ],
        out_specs=pl.BlockSpec(memory_space=pltpu.MemorySpace.VMEM),
        compiler_params=pltpu.CompilerParams(
            vmem_limit_bytes=vmem_limit_bytes),
    )(alpha, b_bil, seq_stacked, adj, w_even, b_merged, w_bil)


# ----------------------------------------------------------------------------
# DGI.forward
# ----------------------------------------------------------------------------
def dgi_forward(params, seq1, seq2, adj, msk=None, samp_bias1=None,
                samp_bias2=None, *, mxu_dtype=jnp.float32):
    # Even-column select `.view(-1, n_h, 2)[:, :, 0]` commuted with the linear
    # GCN + elementwise PReLU: pre-slice parameters host-side (one-time).
    w_even = params["w_gcn"][:, 0::2]                                 # (n_in, n_h)
    b_even = params["b_gcn"][:, 0::2]                                 # (1, n_h)
    b_merged = jnp.concatenate([b_even, b_even], axis=1)              # (1, 2*n_h)
    b_merged = b_merged.astype(jnp.float32)

    alpha = params["prelu_alpha"].reshape(1).astype(jnp.float32)      # SMEM scalar
    b_bil = params["b_bil"].reshape(1).astype(jnp.float32)            # SMEM scalar

    # MXU operands (bf16 recommended on v5e/v6e/v7x; elementwise stays f32).
    seq_stacked = jnp.concatenate([seq1[0], seq2[0]], axis=0).astype(mxu_dtype)
    adj_2d = adj[0].astype(mxu_dtype)                                 # (N, N)
    w_mx = w_even.astype(mxu_dtype)
    w_bil_f32 = params["w_bil"].astype(jnp.float32)

    # Explicit scoped-VMEM budget: input footprint + generous headroom for the
    # f32 intermediates (xw, merged block, h), capped well below every
    # generation's physical VMEM.
    in_bytes = sum(int(x.size) * x.dtype.itemsize
                   for x in (seq_stacked, adj_2d, w_mx, b_merged, w_bil_f32))
    vmem_limit = int(min(64 << 20, max(4 << 20, 8 * in_bytes + (2 << 20))))

    # torch.cat((sc_1, sc_2), dim=1) with each sc of shape (1, N) -> (1, 2N)
    return dgi_fused_call(alpha, b_bil, seq_stacked, adj_2d, w_mx, b_merged,
                          w_bil_f32, vmem_limit_bytes=vmem_limit)


# ----------------------------------------------------------------------------
# Pure-JAX reference (mirrors the original, un-sliced computation)
# ----------------------------------------------------------------------------
def dgi_reference(params, seq1, seq2, adj):
    alpha = params["prelu_alpha"][0]

    def gcn(s):
        h = adj[0] @ (s[0] @ params["w_gcn"]) + params["b_gcn"]
        return jnp.where(h > 0, h, alpha * h)

    n_h = params["w_bil"].shape[0]
    N = seq1.shape[1]
    h1 = gcn(seq1).reshape(N, n_h, 2)[:, :, 0]
    h2 = gcn(seq2).reshape(N, n_h, 2)[:, :, 0]
    c = jax.nn.sigmoid(jnp.mean(h1, axis=0))                          # (n_h,)
    wc = params["w_bil"] @ c                                          # (n_h,)
    sc1 = h1 @ wc + params["b_bil"][0, 0]                             # (N,)
    sc2 = h2 @ wc + params["b_bil"][0, 0]
    return jnp.concatenate([sc1, sc2])[None, :]                       # (1, 2N)


if __name__ == "__main__":
    key = jax.random.PRNGKey(0)
    N, n_in, n_h = 128, 32, 32

    k1, k2, k3, k4, k5 = jax.random.split(key, 5)

    seq1 = jax.random.normal(k1, (1, N, n_in), dtype=jnp.float32)
    seq2 = jax.random.normal(k2, (1, N, n_in), dtype=jnp.float32)
    adj_raw = jax.random.uniform(k3, (1, N, N), dtype=jnp.float32)
    adj = adj_raw / jnp.sum(adj_raw, axis=-1, keepdims=True)          # row-normalized

    # Deterministic parameter init (xavier-uniform style); PReLU default weight 0.25.
    lim_gcn = (6.0 / (n_in + 2 * n_h)) ** 0.5
    lim_bil = (6.0 / (2 * n_h)) ** 0.5
    params = {
        "w_gcn": jax.random.uniform(k4, (n_in, 2 * n_h), jnp.float32, -lim_gcn, lim_gcn),
        "b_gcn": jnp.zeros((1, 2 * n_h), jnp.float32),
        "w_bil": jax.random.uniform(k5, (n_h, n_h), jnp.float32, -lim_bil, lim_bil),
        "b_bil": jnp.zeros((1, 1), jnp.float32),
        "prelu_alpha": jnp.full((1,), 0.25, jnp.float32),
    }

    ref = jax.block_until_ready(dgi_reference(params, seq1, seq2, adj))

    # 1) f32 MXU-operand path: must match the reference tightly.
    logits = jax.block_until_ready(
        dgi_forward(params, seq1, seq2, adj, msk=None, samp_bias1=None,
                    samp_bias2=None, mxu_dtype=jnp.float32))
    assert logits.shape == (1, 2 * N), logits.shape
    assert jnp.allclose(logits, ref, atol=1e-4, rtol=1e-4), (
        float(jnp.max(jnp.abs(logits - ref))))

    # 2) bf16 MXU-operand path (v5e/v6e/v7x perf recommendation): f32 accumulation
    #    and f32 elementwise; compared at a bf16-operand-rounding tolerance.
    logits_bf16 = jax.block_until_ready(
        dgi_forward(params, seq1, seq2, adj, msk=None, samp_bias1=None,
                    samp_bias2=None, mxu_dtype=jnp.bfloat16))
    assert jnp.allclose(logits_bf16, ref, atol=5e-2, rtol=5e-2), (
        float(jnp.max(jnp.abs(logits_bf16 - ref))))

    print("KERNEL_OK")
</pallas_src>

<mosaic_0001>
module attributes {stable_mosaic.version = 11 : i64} {
  func.func @_dgi_fused_kernel(%arg0: memref<1xf32, #tpu.memory_space<smem>>, %arg1: memref<1xf32, #tpu.memory_space<smem>>, %arg2: memref<256x32xf32, #tpu.memory_space<vmem>>, %arg3: memref<128x128xf32, #tpu.memory_space<vmem>>, %arg4: memref<32x32xf32, #tpu.memory_space<vmem>>, %arg5: memref<1x64xf32, #tpu.memory_space<vmem>>, %arg6: memref<32x32xf32, #tpu.memory_space<vmem>>, %arg7: memref<1x256xf32, #tpu.memory_space<vmem>>) attributes {dimension_semantics = [], scalar_prefetch = 0 : i64, scratch_operands = 0 : i64, tpu.core_type = #tpu.core_type<tc>} {
    %c0 = arith.constant 0 : index
    %0 = memref.load %arg0[%c0] : memref<1xf32, #tpu.memory_space<smem>>
    %c0_0 = arith.constant 0 : index
    %1 = memref.load %arg1[%c0_0] : memref<1xf32, #tpu.memory_space<smem>>
    %c0_1 = arith.constant 0 : index
    %c0_2 = arith.constant 0 : index
    %2 = vector.load %arg3[%c0_1, %c0_2] : memref<128x128xf32, #tpu.memory_space<vmem>>, vector<128x128xf32>
    %c0_3 = arith.constant 0 : index
    %c0_4 = arith.constant 0 : index
    %3 = vector.load %arg4[%c0_3, %c0_4] : memref<32x32xf32, #tpu.memory_space<vmem>>, vector<32x32xf32>
    %c0_5 = arith.constant 0 : index
    %c0_6 = arith.constant 0 : index
    %4 = vector.load %arg2[%c0_5, %c0_6] : memref<256x32xf32, #tpu.memory_space<vmem>>, vector<256x32xf32>
    %cst = arith.constant dense<0.000000e+00> : vector<256x32xf32>
    %5 = tpu.matmul %4, %3, %cst {dimension_numbers = #tpu.dot_dimension_numbers<[1], [0], [0], [1], [0, 0, 1, 1], [], []>} : vector<256x32xf32>, vector<32x32xf32>, vector<256x32xf32> -> vector<256x32xf32>
    %6 = vector.extract_strided_slice %5 {offsets = [0, 0], sizes = [128, 32], strides = [1, 1]} : vector<256x32xf32> to vector<128x32xf32>
    %7 = vector.extract_strided_slice %5 {offsets = [128, 0], sizes = [128, 32], strides = [1, 1]} : vector<256x32xf32> to vector<128x32xf32>
    %8 = tpu.concatenate %6, %7 in 1 : vector<128x32xf32>, vector<128x32xf32> -> vector<128x64xf32>
    %cst_7 = arith.constant dense<0.000000e+00> : vector<128x64xf32>
    %9 = tpu.matmul %2, %8, %cst_7 {dimension_numbers = #tpu.dot_dimension_numbers<[1], [0], [0], [1], [0, 0, 1, 1], [], []>} : vector<128x128xf32>, vector<128x64xf32>, vector<128x64xf32> -> vector<128x64xf32>
    %c0_8 = arith.constant 0 : index
    %c0_9 = arith.constant 0 : index
    %10 = vector.load %arg5[%c0_8, %c0_9] : memref<1x64xf32, #tpu.memory_space<vmem>>, vector<1x64xf32>
    %11 = vector.broadcast %10 : vector<1x64xf32> to vector<128x64xf32>
    %12 = arith.addf %9, %11 : vector<128x64xf32>
    %cst_10 = arith.constant 0.000000e+00 : f32
    %13 = vector.broadcast %cst_10 : f32 to vector<128x64xf32>
    %14 = arith.cmpf ogt, %12, %13 : vector<128x64xf32>
    %15 = vector.broadcast %0 : f32 to vector<128x64xf32>
    %16 = arith.mulf %15, %12 : vector<128x64xf32>
    %17 = arith.select %14, %12, %16 : vector<128x64xi1>, vector<128x64xf32>
    %18 = vector.extract_strided_slice %17 {offsets = [0, 0], sizes = [128, 32], strides = [1, 1]} : vector<128x64xf32> to vector<128x32xf32>
    %19 = vector.extract_strided_slice %17 {offsets = [0, 32], sizes = [128, 32], strides = [1, 1]} : vector<128x64xf32> to vector<128x32xf32>
    %cst_11 = arith.constant dense<0.000000e+00> : vector<32xf32>
    %20 = vector.multi_reduction <add>, %18, %cst_11 [0] : vector<128x32xf32> to vector<32xf32>
    %21 = vector.shape_cast %20 : vector<32xf32> to vector<1x32xf32>
    %cst_12 = arith.constant 7.812500e-03 : f32
    %22 = vector.broadcast %cst_12 : f32 to vector<1x32xf32>
    %23 = arith.mulf %21, %22 : vector<1x32xf32>
    %24 = arith.negf %23 : vector<1x32xf32>
    %25 = math.exp %24 : vector<1x32xf32>
    %cst_13 = arith.constant 1.000000e+00 : f32
    %26 = vector.broadcast %cst_13 : f32 to vector<1x32xf32>
    %27 = arith.addf %26, %25 : vector<1x32xf32>
    %28 = arith.divf %26, %27 : vector<1x32xf32>
    %c0_14 = arith.constant 0 : index
    %c0_15 = arith.constant 0 : index
    %29 = vector.load %arg6[%c0_14, %c0_15] : memref<32x32xf32, #tpu.memory_space<vmem>>, vector<32x32xf32>
    %cst_16 = arith.constant dense<0.000000e+00> : vector<1x32xf32>
    %30 = tpu.matmul %28, %29, %cst_16 {dimension_numbers = #tpu.dot_dimension_numbers<[1], [1], [0], [0], [0, 0, 1, 0], [], []>} : vector<1x32xf32>, vector<32x32xf32>, vector<1x32xf32> -> vector<1x32xf32>
    %cst_17 = arith.constant dense<0.000000e+00> : vector<1x128xf32>
    %31 = tpu.matmul %30, %18, %cst_17 {dimension_numbers = #tpu.dot_dimension_numbers<[1], [1], [0], [0], [0, 0, 1, 0], [], []>} : vector<1x32xf32>, vector<128x32xf32>, vector<1x128xf32> -> vector<1x128xf32>
    %cst_18 = arith.constant dense<0.000000e+00> : vector<1x128xf32>
    %32 = tpu.matmul %30, %19, %cst_18 {dimension_numbers = #tpu.dot_dimension_numbers<[1], [1], [0], [0], [0, 0, 1, 0], [], []>} : vector<1x32xf32>, vector<128x32xf32>, vector<1x128xf32> -> vector<1x128xf32>
    %33 = vector.broadcast %1 : f32 to vector<1x128xf32>
    %34 = arith.addf %31, %33 : vector<1x128xf32>
    %c0_19 = arith.constant 0 : index
    %c0_20 = arith.constant 0 : index
    %35 = vector.load %arg7[%c0_19, %c0_20] : memref<1x256xf32, #tpu.memory_space<vmem>>, vector<1x128xf32>
    tpu.vector_store %arg7[%c0_19, %c0_20], %34 {strides = array<i32>} : memref<1x256xf32, #tpu.memory_space<vmem>>, vector<1x128xf32>,
    %36 = vector.broadcast %1 : f32 to vector<1x128xf32>
    %37 = arith.addf %32, %36 : vector<1x128xf32>
    %c0_21 = arith.constant 0 : index
    %c128 = arith.constant 128 : index
    %38 = vector.load %arg7[%c0_21, %c128] : memref<1x256xf32, #tpu.memory_space<vmem>>, vector<1x128xf32>
    tpu.vector_store %arg7[%c0_21, %c128], %37 {strides = array<i32>} : memref<1x256xf32, #tpu.memory_space<vmem>>, vector<1x128xf32>,
    return
  }
}

</mosaic_0001>

<llo_original>
// kernel: tpu_custom_call.1
$region0: #{tpu_custom_call.1}
  #allocation0 [shape = 'u32[]', space=smem, size = 0x4, offset = 0x4, fixed_abs, tag = 'smem constant byte address 0x4 - core index']
  #allocation1 [shape = 'u32[72,128]{1,0:T(1,128)}', space=vmem, size = 0x9000, scoped, tag = 'internal scratch']
  #allocation2 [shape = 'f32[1]{0:T(128)S(6)}', space=smem, size = 0x200, scoped, tag = 'scoped memory for tpu_custom_call.1']
  #allocation3 [shape = 'f32[1]{0:T(128)S(6)}', space=smem, size = 0x200, scoped, tag = 'scoped memory for tpu_custom_call.1']
  %s0 = inlined_call_operand.<no memory space> [shape: f32[1], index: 0, kind: input, shape index: {}]
  %s1 = inlined_call_operand.<no memory space> [shape: f32[1], index: 1, kind: input, shape index: {}]
  %s2 = inlined_call_operand.vmem [shape: f32[256,32], index: 2, kind: input, shape index: {}]
  %s3 = inlined_call_operand.vmem [shape: f32[128,128], index: 3, kind: input, shape index: {}]
  %s4 = inlined_call_operand.vmem [shape: f32[32,32], index: 4, kind: input, shape index: {}]
  %s5 = inlined_call_operand.vmem [shape: f32[1,64], index: 5, kind: input, shape index: {}]
  %s6 = inlined_call_operand.vmem [shape: f32[32,32], index: 6, kind: input, shape index: {}]
  %s7 = inlined_call_operand.hbm [shape: f32[1,256], index: 7, kind: output, shape index: {}]
  %s8 = sld [smem:[#allocation0]]
  $region38: #{tpu_custom_call.1} parent=0
    _
  %s10 = ssub.s32 1, %s8
  %s11 = scalar_select 0, %s10, %s8
  %12 = sst [smem:[#allocation2]] %s0
  %13 = sst [smem:[#allocation3]] %s1
  $region1: #{tpu_custom_call.1} parent=0
    #allocation4 [shape = 'u8[1024]{0}', space=vmem, size = 0x400, scoped, tag = 'output window, operand 0, single buffered']
    #allocation5 [shape = 's32[1]{0}', space=sflag, size = 0x4, scoped, tag = 'scoped memory for tpu_custom_call.1']
    %14 = vsyncpa [#allocation5], 0
    // Predicated region
    $region2: #{tpu_custom_call.1} parent=1 // pred_check
      _
    $region3: #{tpu_custom_call.1} parent=1 // pred_check_branch
      %16 = sbr.rel (0) target = $region5
    $region4: #{tpu_custom_call.1} parent=1 // pred_region
      _
    $region5: #{tpu_custom_call.1} parent=1 // pred_fallthru
      _
    // Predicated region
    $region6: #{tpu_custom_call.1} parent=1 // pred_check
      _
    $region7: #{tpu_custom_call.1} parent=1 // pred_check_branch
      %18 = sbr.rel (0) target = $region9
    $region8: #{tpu_custom_call.1} parent=1 // pred_region
      _
    $region9: #{tpu_custom_call.1} parent=1 // pred_fallthru
      _
    // Predicated region
    $region10: #{tpu_custom_call.1} parent=1 // pred_check
      _
    $region11: #{tpu_custom_call.1} parent=1 // pred_check_branch
      %20 = sbr.rel (0) target = $region13
    $region12: #{tpu_custom_call.1} parent=1 // pred_region
      _
    $region13: #{tpu_custom_call.1} parent=1 // pred_fallthru
      _
    // Predicated region
    $region14: #{tpu_custom_call.1} parent=1 // pred_check
      _
    $region15: #{tpu_custom_call.1} parent=1 // pred_check_branch
      %22 = sbr.rel (0) target = $region17
    $region16: #{tpu_custom_call.1} parent=1 // pred_region
      _
    $region17: #{tpu_custom_call.1} parent=1 // pred_fallthru
      _
    // Predicated region
    $region18: #{tpu_custom_call.1} parent=1 // pred_check
      _
    $region19: #{tpu_custom_call.1} parent=1 // pred_check_branch
      %24 = sbr.rel (0) target = $region21
    $region20: #{tpu_custom_call.1} parent=1 // pred_region
      _
    $region21: #{tpu_custom_call.1} parent=1 // pred_fallthru
      _
    // Predicated region
    $region22: #{tpu_custom_call.1} parent=1 // pred_check
      _
    $region23: #{tpu_custom_call.1} parent=1 // pred_check_branch
      %26 = sbr.rel (0) target = $region25
    $region24: #{tpu_custom_call.1} parent=1 // pred_region
      _
    $region25: #{tpu_custom_call.1} parent=1 // pred_fallthru
      _
    // Predicated region
    $region26: #{tpu_custom_call.1} parent=1 // pred_check
      _
    $region27: #{tpu_custom_call.1} parent=1 // pred_check_branch
      %28 = sbr.rel (0) target = $region29
    $region28: #{tpu_custom_call.1} parent=1 // pred_region
      _
    $region29: #{tpu_custom_call.1} parent=1 // pred_fallthru
      _
    %s29 = sld [smem:[#allocation2]]
    %s30 = sld [smem:[#allocation3]]
    %v31 = vld [vmem:[%s3] sm:$0xff]
    %v32 = vld [vmem:[%s3 + $0x8] sm:$0xff]
    %v33 = vld [vmem:[%s3 + $0x10] sm:$0xff]
    %v34 = vld [vmem:[%s3 + $0x18] sm:$0xff]
    %v35 = vld [vmem:[%s3 + $0x20] sm:$0xff]
    %v36 = vld [vmem:[%s3 + $0x28] sm:$0xff]
    %v37 = vld [vmem:[%s3 + $0x30] sm:$0xff]
    %v38 = vld [vmem:[%s3 + $0x38] sm:$0xff]
    %v39 = vld [vmem:[%s3 + $0x40] sm:$0xff]
    %v40 = vld [vmem:[%s3 + $0x48] sm:$0xff]
    %v41 = vld [vmem:[%s3 + $0x50] sm:$0xff]
    %v42 = vld [vmem:[%s3 + $0x58] sm:$0xff]
    %v43 = vld [vmem:[%s3 + $0x60] sm:$0xff]
    %v44 = vld [vmem:[%s3 + $0x68] sm:$0xff]
    %v45 = vld [vmem:[%s3 + $0x70] sm:$0xff]
    %v46 = vld [vmem:[%s3 + $0x78] sm:$0xff]
    %v47 = vld [vmem:[%s4] sm:$0xff]
    %v48 = vld [vmem:[%s4 + $0x8] sm:$0xff]
    %v49 = vld [vmem:[%s4 + $0x10] sm:$0xff]
    %v50 = vld [vmem:[%s4 + $0x18] sm:$0xff]
    %v51 = vld [vmem:[%s2] sm:$0xff]
    %v52 = vld [vmem:[%s2 + $0x8] sm:$0xff]
    %v53 = vld [vmem:[%s2 + $0x10] sm:$0xff]
    %v54 = vld [vmem:[%s2 + $0x18] sm:$0xff]
    %v55 = vld [vmem:[%s2 + $0x20] sm:$0xff]
    %v56 = vld [vmem:[%s2 + $0x28] sm:$0xff]
    %v57 = vld [vmem:[%s2 + $0x30] sm:$0xff]
    %v58 = vld [vmem:[%s2 + $0x38] sm:$0xff]
    %v59 = vld [vmem:[%s2 + $0x40] sm:$0xff]
    %v60 = vld [vmem:[%s2 + $0x48] sm:$0xff]
    %v61 = vld [vmem:[%s2 + $0x50] sm:$0xff]
    %v62 = vld [vmem:[%s2 + $0x58] sm:$0xff]
    %v63 = vld [vmem:[%s2 + $0x60] sm:$0xff]
    %v64 = vld [vmem:[%s2 + $0x68] sm:$0xff]
    %v65 = vld [vmem:[%s2 + $0x70] sm:$0xff]
    %v66 = vld [vmem:[%s2 + $0x78] sm:$0xff]
    %v67 = vld [vmem:[%s2 + $0x80] sm:$0xff]
    %v68 = vld [vmem:[%s2 + $0x88] sm:$0xff]
    %v69 = vld [vmem:[%s2 + $0x90] sm:$0xff]
    %v70 = vld [vmem:[%s2 + $0x98] sm:$0xff]
    %v71 = vld [vmem:[%s2 + $0xa0] sm:$0xff]
    %v72 = vld [vmem:[%s2 + $0xa8] sm:$0xff]
    %v73 = vld [vmem:[%s2 + $0xb0] sm:$0xff]
    %v74 = vld [vmem:[%s2 + $0xb8] sm:$0xff]
    %v75 = vld [vmem:[%s2 + $0xc0] sm:$0xff]
    %v76 = vld [vmem:[%s2 + $0xc8] sm:$0xff]
    %v77 = vld [vmem:[%s2 + $0xd0] sm:$0xff]
    %v78 = vld [vmem:[%s2 + $0xd8] sm:$0xff]
    %v79 = vld [vmem:[%s2 + $0xe0] sm:$0xff]
    %v80 = vld [vmem:[%s2 + $0xe8] sm:$0xff]
    %v81 = vld [vmem:[%s2 + $0xf0] sm:$0xff]
    %v82 = vld [vmem:[%s2 + $0xf8] sm:$0xff]
    %vm83 = vcmask 261120
    %v85 = vsel %vm83, %v51, 0
    %v88 = vsel %vm83, %v52, 0
    %v91 = vsel %vm83, %v53, 0
    %v94 = vsel %vm83, %v54, 0
    %v97 = vsel %vm83, %v55, 0
    %v100 = vsel %vm83, %v56, 0
    %v103 = vsel %vm83, %v57, 0
    %v106 = vsel %vm83, %v58, 0
    %v109 = vsel %vm83, %v59, 0
    %v112 = vsel %vm83, %v60, 0
    %v115 = vsel %vm83, %v61, 0
    %v118 = vsel %vm83, %v62, 0
    %v121 = vsel %vm83, %v63, 0
    %v124 = vsel %vm83, %v64, 0
    %v127 = vsel %vm83, %v65, 0
    %v130 = vsel %vm83, %v66, 0
    %v133 = vsel %vm83, %v67, 0
    %v136 = vsel %vm83, %v68, 0
    %v139 = vsel %vm83, %v69, 0
    %v142 = vsel %vm83, %v70, 0
    %v145 = vsel %vm83, %v71, 0
    %v148 = vsel %vm83, %v72, 0
    %v151 = vsel %vm83, %v73, 0
    %v154 = vsel %vm83, %v74, 0
    %v157 = vsel %vm83, %v75, 0
    %v160 = vsel %vm83, %v76, 0
    %v163 = vsel %vm83, %v77, 0
    %v166 = vsel %vm83, %v78, 0
    %v169 = vsel %vm83, %v79, 0
    %v172 = vsel %vm83, %v80, 0
    %v175 = vsel %vm83, %v81, 0
    %v178 = vsel %vm83, %v82, 0
    %180 = vmatpush.msra.mxu0 0.0
    %181 = vmatpush.msra.mxu0 0.0
    %182 = vmatpush.msra.mxu0 0.0
    %183 = vmatpush.msra.mxu0 0.0
    %184 = vmatpush.msra.mxu0 0.0
    %185 = vmatpush.msra.mxu0 0.0
    %186 = vmatpush.msra.mxu0 0.0
    %187 = vmatpush.msra.mxu0 0.0
    %188 = vmatpush.msra.mxu0 0.0
    %189 = vmatpush.msra.mxu0 0.0
    %190 = vmatpush.msra.mxu0 0.0
    %191 = vmatpush.msra.mxu0 0.0
    %192 = vmatpush.msra.mxu0 %v50
    %193 = vmatpush.msra.mxu0 %v49
    %194 = vmatpush.msra.mxu0 %v48
    %195 = vmatpush.msra.mxu0 %v47
    %196 = vmatmul.f32.gmra.mxu0 %v85
    %v197 = vpop.f32.mrf.mxu0
    %v198 = vadd.f32 0.0, %v197
    %199 = vmatmul.f32.gmra.mxu0 %v88
    %v200 = vpop.f32.mrf.mxu0
    %v201 = vadd.f32 0.0, %v200
    %202 = vmatmul.f32.gmra.mxu0 %v91
    %v203 = vpop.f32.mrf.mxu0
    %v204 = vadd.f32 0.0, %v203
    %205 = vmatmul.f32.gmra.mxu0 %v94
    %v206 = vpop.f32.mrf.mxu0
    %v207 = vadd.f32 0.0, %v206
    %208 = vmatmul.f32.gmra.mxu0 %v97
    %v209 = vpop.f32.mrf.mxu0
    %v210 = vadd.f32 0.0, %v209
    %211 = vmatmul.f32.gmra.mxu0 %v100
    %v212 = vpop.f32.mrf.mxu0
    %v213 = vadd.f32 0.0, %v212
    %214 = vmatmul.f32.gmra.mxu0 %v103
    %v215 = vpop.f32.mrf.mxu0
    %v216 = vadd.f32 0.0, %v215
    %217 = vmatmul.f32.gmra.mxu0 %v106
    %v218 = vpop.f32.mrf.mxu0
    %v219 = vadd.f32 0.0, %v218
    %220 = vmatmul.f32.gmra.mxu0 %v109
    %v221 = vpop.f32.mrf.mxu0
    %v222 = vadd.f32 0.0, %v221
    %223 = vmatmul.f32.gmra.mxu0 %v112
    %v224 = vpop.f32.mrf.mxu0
    %v225 = vadd.f32 0.0, %v224
    %226 = vmatmul.f32.gmra.mxu0 %v115
    %v227 = vpop.f32.mrf.mxu0
    %v228 = vadd.f32 0.0, %v227
    %229 = vmatmul.f32.gmra.mxu0 %v118
    %v230 = vpop.f32.mrf.mxu0
    %v231 = vadd.f32 0.0, %v230
    %232 = vmatmul.f32.gmra.mxu0 %v121
    %v233 = vpop.f32.mrf.mxu0
    %v234 = vadd.f32 0.0, %v233
    %235 = vmatmul.f32.gmra.mxu0 %v124
    %v236 = vpop.f32.mrf.mxu0
    %v237 = vadd.f32 0.0, %v236
    %238 = vmatmul.f32.gmra.mxu0 %v127
    %v239 = vpop.f32.mrf.mxu0
    %v240 = vadd.f32 0.0, %v239
    %241 = vmatmul.f32.gmra.mxu0 %v130
    %v242 = vpop.f32.mrf.mxu0
    %v243 = vadd.f32 0.0, %v242
    %244 = vmatmul.f32.gmra.mxu0 %v133
    %v245 = vpop.f32.mrf.mxu0
    %v246 = vadd.f32 0.0, %v245
    %247 = vmatmul.f32.gmra.mxu0 %v136
    %v248 = vpop.f32.mrf.mxu0
    %v249 = vadd.f32 0.0, %v248
    %250 = vmatmul.f32.gmra.mxu0 %v139
    %v251 = vpop.f32.mrf.mxu0
    %v252 = vadd.f32 0.0, %v251
    %253 = vmatmul.f32.gmra.mxu0 %v142
    %v254 = vpop.f32.mrf.mxu0
    %v255 = vadd.f32 0.0, %v254
    %256 = vmatmul.f32.gmra.mxu0 %v145
    %v257 = vpop.f32.mrf.mxu0
    %v258 = vadd.f32 0.0, %v257
    %259 = vmatmul.f32.gmra.mxu0 %v148
    %v260 = vpop.f32.mrf.mxu0
    %v261 = vadd.f32 0.0, %v260
    %262 = vmatmul.f32.gmra.mxu0 %v151
    %v263 = vpop.f32.mrf.mxu0
    %v264 = vadd.f32 0.0, %v263
    %265 = vmatmul.f32.gmra.mxu0 %v154
    %v266 = vpop.f32.mrf.mxu0
    %v267 = vadd.f32 0.0, %v266
    %268 = vmatmul.f32.gmra.mxu0 %v157
    %v269 = vpop.f32.mrf.mxu0
    %v270 = vadd.f32 0.0, %v269
    %271 = vmatmul.f32.gmra.mxu0 %v160
    %v272 = vpop.f32.mrf.mxu0
    %v273 = vadd.f32 0.0, %v272
    %274 = vmatmul.f32.gmra.mxu0 %v163
    %v275 = vpop.f32.mrf.mxu0
    %v276 = vadd.f32 0.0, %v275
    %277 = vmatmul.f32.gmra.mxu0 %v166
    %v278 = vpop.f32.mrf.mxu0
    %v279 = vadd.f32 0.0, %v278
    %280 = vmatmul.f32.gmra.mxu0 %v169
    %v281 = vpop.f32.mrf.mxu0
    %v282 = vadd.f32 0.0, %v281
    %283 = vmatmul.f32.gmra.mxu0 %v172
    %v284 = vpop.f32.mrf.mxu0
    %v285 = vadd.f32 0.0, %v284
    %286 = vmatmul.f32.gmra.mxu0 %v175
    %v287 = vpop.f32.mrf.mxu0
    %v288 = vadd.f32 0.0, %v287
    %289 = vmatmul.f32.gmra.mxu0 %v178
    %v290 = vpop.f32.mrf.mxu0
    %v291 = vadd.f32 0.0, %v290
    %292 = vdwg.mxu0
    %309 = vrot.lane.b32.xlu0 %v246, 32
    %v310 = vpop.permute.xlu0 %309
    %311 = vrot.lane.b32.xlu0 %v249, 32
    %v312 = vpop.permute.xlu0 %311
    %313 = vrot.lane.b32.xlu0 %v252, 32
    %v314 = vpop.permute.xlu0 %313
    %315 = vrot.lane.b32.xlu0 %v255, 32
    %v316 = vpop.permute.xlu0 %315
    %317 = vrot.lane.b32.xlu0 %v258, 32
    %v318 = vpop.permute.xlu0 %317
    %319 = vrot.lane.b32.xlu0 %v261, 32
    %v320 = vpop.permute.xlu0 %319
    %321 = vrot.lane.b32.xlu0 %v264, 32
    %v322 = vpop.permute.xlu0 %321
    %323 = vrot.lane.b32.xlu0 %v267, 32
    %v324 = vpop.permute.xlu0 %323
    %325 = vrot.lane.b32.xlu0 %v270, 32
    %v326 = vpop.permute.xlu0 %325
    %327 = vrot.lane.b32.xlu0 %v273, 32
    %v328 = vpop.permute.xlu0 %327
    %329 = vrot.lane.b32.xlu0 %v276, 32
    %v330 = vpop.permute.xlu0 %329
    %331 = vrot.lane.b32.xlu0 %v279, 32
    %v332 = vpop.permute.xlu0 %331
    %333 = vrot.lane.b32.xlu0 %v282, 32
    %v334 = vpop.permute.xlu0 %333
    %335 = vrot.lane.b32.xlu0 %v285, 32
    %v336 = vpop.permute.xlu0 %335
    %337 = vrot.lane.b32.xlu0 %v288, 32
    %v338 = vpop.permute.xlu0 %337
    %339 = vrot.lane.b32.xlu0 %v291, 32
    %v340 = vpop.permute.xlu0 %339
    %v357 = vsel %vm83, %v198, %v310
    %v358 = vsel %vm83, %v201, %v312
    %v359 = vsel %vm83, %v204, %v314
    %v360 = vsel %vm83, %v207, %v316
    %v361 = vsel %vm83, %v210, %v318
    %v362 = vsel %vm83, %v213, %v320
    %v363 = vsel %vm83, %v216, %v322
    %v364 = vsel %vm83, %v219, %v324
    %v365 = vsel %vm83, %v222, %v326
    %v366 = vsel %vm83, %v225, %v328
    %v367 = vsel %vm83, %v228, %v330
    %v368 = vsel %vm83, %v231, %v332
    %v369 = vsel %vm83, %v234, %v334
    %v370 = vsel %vm83, %v237, %v336
    %v371 = vsel %vm83, %v240, %v338
    %v372 = vsel %vm83, %v243, %v340
    %v373 = vld [vmem:[%s5] sm:$0x1]
    %v375 = vperm.slane %v373, 0
    %377 = vmatpush.msra.mxu0 %v372
    %378 = vmatpush.msra.mxu0 %v371
    %379 = vmatpush.msra.mxu0 %v370
    %380 = vmatpush.msra.mxu0 %v369
    %381 = vmatpush.msra.mxu0 %v368
    %382 = vmatpush.msra.mxu0 %v367
    %383 = vmatpush.msra.mxu0 %v366
    %384 = vmatpush.msra.mxu0 %v365
    %385 = vmatpush.msra.mxu0 %v364
    %386 = vmatpush.msra.mxu0 %v363
    %387 = vmatpush.msra.mxu0 %v362
    %388 = vmatpush.msra.mxu0 %v361
    %389 = vmatpush.msra.mxu0 %v360
    %390 = vmatpush.msra.mxu0 %v359
    %391 = vmatpush.msra.mxu0 %v358
    %392 = vmatpush.msra.mxu0 %v357
    %393 = vmatmul.f32.gmra.mxu0 %v31
    %v394 = vpop.f32.mrf.mxu0
    %v395 = vadd.f32 %v375, %v394
    %396 = vmatmul.f32.gmra.mxu0 %v32
    %v397 = vpop.f32.mrf.mxu0
    %v398 = vadd.f32 %v375, %v397
    %399 = vmatmul.f32.gmra.mxu0 %v33
    %v400 = vpop.f32.mrf.mxu0
    %v401 = vadd.f32 %v375, %v400
    %402 = vmatmul.f32.gmra.mxu0 %v34
    %v403 = vpop.f32.mrf.mxu0
    %v404 = vadd.f32 %v375, %v403
    %405 = vmatmul.f32.gmra.mxu0 %v35
    %v406 = vpop.f32.mrf.mxu0
    %v407 = vadd.f32 %v375, %v406
    %408 = vmatmul.f32.gmra.mxu0 %v36
    %v409 = vpop.f32.mrf.mxu0
    %v410 = vadd.f32 %v375, %v409
    %411 = vmatmul.f32.gmra.mxu0 %v37
    %v412 = vpop.f32.mrf.mxu0
    %v413 = vadd.f32 %v375, %v412
    %414 = vmatmul.f32.gmra.mxu0 %v38
    %v415 = vpop.f32.mrf.mxu0
    %v416 = vadd.f32 %v375, %v415
    %417 = vmatmul.f32.gmra.mxu0 %v39
    %v418 = vpop.f32.mrf.mxu0
    %v419 = vadd.f32 %v375, %v418
    %420 = vmatmul.f32.gmra.mxu0 %v40
    %v421 = vpop.f32.mrf.mxu0
    %v422 = vadd.f32 %v375, %v421
    %423 = vmatmul.f32.gmra.mxu0 %v41
    %v424 = vpop.f32.mrf.mxu0
    %v425 = vadd.f32 %v375, %v424
    %426 = vmatmul.f32.gmra.mxu0 %v42
    %v427 = vpop.f32.mrf.mxu0
    %v428 = vadd.f32 %v375, %v427
    %429 = vmatmul.f32.gmra.mxu0 %v43
    %v430 = vpop.f32.mrf.mxu0
    %v431 = vadd.f32 %v375, %v430
    %432 = vmatmul.f32.gmra.mxu0 %v44
    %v433 = vpop.f32.mrf.mxu0
    %v434 = vadd.f32 %v375, %v433
    %435 = vmatmul.f32.gmra.mxu0 %v45
    %v436 = vpop.f32.mrf.mxu0
    %v437 = vadd.f32 %v375, %v436
    %438 = vmatmul.f32.gmra.mxu0 %v46
    %v439 = vpop.f32.mrf.mxu0
    %v440 = vadd.f32 %v375, %v439
    %441 = vdwg.mxu0
    %vm442 = vcmp.gt.f32.partialorder %v395, 0.0
    %vm443 = vcmp.gt.f32.partialorder %v398, 0.0
    %vm444 = vcmp.gt.f32.partialorder %v401, 0.0
    %vm445 = vcmp.gt.f32.partialorder %v404, 0.0
    %vm446 = vcmp.gt.f32.partialorder %v407, 0.0
    %vm447 = vcmp.gt.f32.partialorder %v410, 0.0
    %vm448 = vcmp.gt.f32.partialorder %v413, 0.0
    %vm449 = vcmp.gt.f32.partialorder %v416, 0.0
    %vm450 = vcmp.gt.f32.partialorder %v419, 0.0
    %vm451 = vcmp.gt.f32.partialorder %v422, 0.0
    %vm452 = vcmp.gt.f32.partialorder %v425, 0.0
    %vm453 = vcmp.gt.f32.partialorder %v428, 0.0
    %vm454 = vcmp.gt.f32.partialorder %v431, 0.0
    %vm455 = vcmp.gt.f32.partialorder %v434, 0.0
    %vm456 = vcmp.gt.f32.partialorder %v437, 0.0
    %vm457 = vcmp.gt.f32.partialorder %v440, 0.0
    %v458 = vstv %s29
    %v459 = vmul.f32 %v458, %v395
    %v460 = vmul.f32 %v458, %v398
    %v461 = vmul.f32 %v458, %v401
    %v462 = vmul.f32 %v458, %v404
    %v463 = vmul.f32 %v458, %v407
    %v464 = vmul.f32 %v458, %v410
    %v465 = vmul.f32 %v458, %v413
    %v466 = vmul.f32 %v458, %v416
    %v467 = vmul.f32 %v458, %v419
    %v468 = vmul.f32 %v458, %v422
    %v469 = vmul.f32 %v458, %v425
    %v470 = vmul.f32 %v458, %v428
    %v471 = vmul.f32 %v458, %v431
    %v472 = vmul.f32 %v458, %v434
    %v473 = vmul.f32 %v458, %v437
    %v474 = vmul.f32 %v458, %v440
    %v475 = vsel %vm442, %v395, %v459
    %v476 = vsel %vm443, %v398, %v460
    %v477 = vsel %vm444, %v401, %v461
    %v478 = vsel %vm445, %v404, %v462
    %v479 = vsel %vm446, %v407, %v463
    %v480 = vsel %vm447, %v410, %v464
    %v481 = vsel %vm448, %v413, %v465
    %v482 = vsel %vm449, %v416, %v466
    %v483 = vsel %vm450, %v419, %v467
    %v484 = vsel %vm451, %v422, %v468
    %v485 = vsel %vm452, %v425, %v469
    %v486 = vsel %vm453, %v428, %v470
    %v487 = vsel %vm454, %v431, %v471
    %v488 = vsel %vm455, %v434, %v472
    %v489 = vsel %vm456, %v437, %v473
    %v490 = vsel %vm457, %v440, %v474
    %v491 = vsel %vm83, %v475, 0.0
    %v492 = vsel %vm83, %v476, 0.0
    %v493 = vadd.f32 %v491, %v492
    %v494 = vsel %vm83, %v477, 0.0
    %v495 = vadd.f32 %v493, %v494
    %v496 = vsel %vm83, %v478, 0.0
    %v497 = vadd.f32 %v495, %v496
    %v498 = vsel %vm83, %v479, 0.0
    %v499 = vadd.f32 %v497, %v498
    %v500 = vsel %vm83, %v480, 0.0
    %v501 = vadd.f32 %v499, %v500
    %v502 = vsel %vm83, %v481, 0.0
    %v503 = vadd.f32 %v501, %v502
    %v504 = vsel %vm83, %v482, 0.0
    %v505 = vadd.f32 %v503, %v504
    %v506 = vsel %vm83, %v483, 0.0
    %v507 = vadd.f32 %v505, %v506
    %v508 = vsel %vm83, %v484, 0.0
    %v509 = vadd.f32 %v507, %v508
    %v510 = vsel %vm83, %v485, 0.0
    %v511 = vadd.f32 %v509, %v510
    %v512 = vsel %vm83, %v486, 0.0
    %v513 = vadd.f32 %v511, %v512
    %v514 = vsel %vm83, %v487, 0.0
    %v515 = vadd.f32 %v513, %v514
    %v516 = vsel %vm83, %v488, 0.0
    %v517 = vadd.f32 %v515, %v516
    %v518 = vsel %vm83, %v489, 0.0
    %v519 = vadd.f32 %v517, %v518
    %v520 = vsel %vm83, %v490, 0.0
    %v521 = vadd.f32 %v519, %v520
    %v522 = vrot.slane %v521, 4
    %v523 = vadd.f32 %v521, %v522
    %v524 = vrot.slane %v523, 2
    %v525 = vadd.f32 %v523, %v524
    %v526 = vrot.slane %v525, 1
    %v527 = vadd.f32 %v525, %v526
    %v528 = vmul.f32 %v527, 0.0078125
    %v529 = vxor.u32 %v528, 2147483648
    %v530 = vmul.f32 %v529, 1.442695
    %v531 = vpow.pop %v530
    %v532 = vadd.f32 %v531, 1.0
    %v533 = vrcp.pop %v532
    %v534 = vmul.f32 %v532, %v533
    %v535 = vsub.f32 1.0, %v534
    %v536 = vmul.f32 %v533, %v535
    %v537 = vadd.f32 %v533, %v536
    %vm538 = vweird.f32 %v532
    %vm539 = vweird.f32 %v533
    %vm540 = vmor %vm538, %vm539
    %v541 = vsel %vm540, %v533, %v537
    %v542 = vand.u32 2147483647, %v532
    %vm543 = vcmp.eq.f32.partialorder %v542, 8.507059e+37
    %v544 = vand.u32 %v532, 2147483648
    %v545 = vor.u32 1.1754944e-38, %v544
    %v546 = vsel %vm543, %v545, %v541
    %v547 = vmul.f32 1.0, %v546
    %v548 = vld [vmem:[%s6] sm:$0xff]
    %v549 = vld [vmem:[%s6 + $0x8] sm:$0xff]
    %v550 = vld [vmem:[%s6 + $0x10] sm:$0xff]
    %v551 = vld [vmem:[%s6 + $0x18] sm:$0xff]
    %v553 = vsel %vm83, %v547, 0
    %v556 = vsel %vm83, %v548, 0
    %v559 = vsel %vm83, %v549, 0
    %v562 = vsel %vm83, %v550, 0
    %v565 = vsel %vm83, %v551, 0
    %567 = vmatpush.xpose.msra.mxu0 0.0
    %568 = vmatpush.xpose.msra.mxu0 0.0
    %569 = vmatpush.xpose.msra.mxu0 0.0
    %570 = vmatpush.xpose.msra.mxu0 0.0
    %571 = vmatpush.xpose.msra.mxu0 0.0
    %572 = vmatpush.xpose.msra.mxu0 0.0
    %573 = vmatpush.xpose.msra.mxu0 0.0
    %574 = vmatpush.xpose.msra.mxu0 0.0
    %575 = vmatpush.xpose.msra.mxu0 0.0
    %576 = vmatpush.xpose.msra.mxu0 0.0
    %577 = vmatpush.xpose.msra.mxu0 0.0
    %578 = vmatpush.xpose.msra.mxu0 0.0
    %579 = vmatpush.xpose.msra.mxu0 %v565
    %580 = vmatpush.xpose.msra.mxu0 %v562
    %581 = vmatpush.xpose.msra.mxu0 %v559
    %582 = vmatpush.xpose.msra.mxu0 %v556
    %583 = vmatmul.f32.gmra.mxu0 %v553
    %v584 = vpop.f32.mrf.mxu0
    %v585 = vadd.f32 0.0, %v584
    %586 = vdwg.mxu0
    %v587 = vstv %s30
    %v589 = vsel %vm83, %v585, 0
    %v592 = vsel %vm83, %v475, 0
    %v595 = vsel %vm83, %v476, 0
    %v598 = vsel %vm83, %v477, 0
    %v601 = vsel %vm83, %v478, 0
    %v604 = vsel %vm83, %v479, 0
    %v607 = vsel %vm83, %v480, 0
    %v610 = vsel %vm83, %v481, 0
    %v613 = vsel %vm83, %v482, 0
    %v616 = vsel %vm83, %v483, 0
    %v619 = vsel %vm83, %v484, 0
    %v622 = vsel %vm83, %v485, 0
    %v625 = vsel %vm83, %v486, 0
    %v628 = vsel %vm83, %v487, 0
    %v631 = vsel %vm83, %v488, 0
    %v634 = vsel %vm83, %v489, 0
    %v637 = vsel %vm83, %v490, 0
    %639 = vmatpush.xpose.msra.mxu0 %v637
    %640 = vmatpush.xpose.msra.mxu0 %v634
    %641 = vmatpush.xpose.msra.mxu0 %v631
    %642 = vmatpush.xpose.msra.mxu0 %v628
    %643 = vmatpush.xpose.msra.mxu0 %v625
    %644 = vmatpush.xpose.msra.mxu0 %v622
    %645 = vmatpush.xpose.msra.mxu0 %v619
    %646 = vmatpush.xpose.msra.mxu0 %v616
    %647 = vmatpush.xpose.msra.mxu0 %v613
    %648 = vmatpush.xpose.msra.mxu0 %v610
    %649 = vmatpush.xpose.msra.mxu0 %v607
    %650 = vmatpush.xpose.msra.mxu0 %v604
    %651 = vmatpush.xpose.msra.mxu0 %v601
    %652 = vmatpush.xpose.msra.mxu0 %v598
    %653 = vmatpush.xpose.msra.mxu0 %v595
    %654 = vmatpush.xpose.msra.mxu0 %v592
    %655 = vmatmul.f32.gmra.mxu0 %v589
    %v656 = vpop.f32.mrf.mxu0
    %v657 = vadd.f32 %v587, %v656
    %658 = vdwg.mxu0
    %v659 = vlaneseq
    %vm660 = vcmp.ge.s32.totalorder %v659, 0
    %vm661 = vcmp.lt.s32.totalorder %v659, 128
    %vm662 = vmand %vm660, %vm661
    %663 = vst.msk [vmem:[#allocation4] sm:$0x1] %vm662, %v657
    %664 = vrot.lane.b32.xlu0 %v475, 96
    %v665 = vpop.permute.xlu0 %664
    %666 = vrot.lane.b32.xlu0 %v476, 96
    %v667 = vpop.permute.xlu0 %666
    %668 = vrot.lane.b32.xlu0 %v477, 96
    %v669 = vpop.permute.xlu0 %668
    %670 = vrot.lane.b32.xlu0 %v478, 96
    %v671 = vpop.permute.xlu0 %670
    %672 = vrot.lane.b32.xlu0 %v479, 96
    %v673 = vpop.permute.xlu0 %672
    %674 = vrot.lane.b32.xlu0 %v480, 96
    %v675 = vpop.permute.xlu0 %674
    %676 = vrot.lane.b32.xlu0 %v481, 96
    %v677 = vpop.permute.xlu0 %676
    %678 = vrot.lane.b32.xlu0 %v482, 96
    %v679 = vpop.permute.xlu0 %678
    %680 = vrot.lane.b32.xlu0 %v483, 96
    %v681 = vpop.permute.xlu0 %680
    %682 = vrot.lane.b32.xlu0 %v484, 96
    %v683 = vpop.permute.xlu0 %682
    %684 = vrot.lane.b32.xlu0 %v485, 96
    %v685 = vpop.permute.xlu0 %684
    %686 = vrot.lane.b32.xlu0 %v486, 96
    %v687 = vpop.permute.xlu0 %686
    %688 = vrot.lane.b32.xlu0 %v487, 96
    %v689 = vpop.permute.xlu0 %688
    %690 = vrot.lane.b32.xlu0 %v488, 96
    %v691 = vpop.permute.xlu0 %690
    %692 = vrot.lane.b32.xlu0 %v489, 96
    %v693 = vpop.permute.xlu0 %692
    %694 = vrot.lane.b32.xlu0 %v490, 96
    %v695 = vpop.permute.xlu0 %694
    %v696 = vsel %vm83, %v665, 0
    %v698 = vsel %vm83, %v667, 0
    %v700 = vsel %vm83, %v669, 0
    %v702 = vsel %vm83, %v671, 0
    %v704 = vsel %vm83, %v673, 0
    %v706 = vsel %vm83, %v675, 0
    %v708 = vsel %vm83, %v677, 0
    %v710 = vsel %vm83, %v679, 0
    %v712 = vsel %vm83, %v681, 0
    %v714 = vsel %vm83, %v683, 0
    %v716 = vsel %vm83, %v685, 0
    %v718 = vsel %vm83, %v687, 0
    %v720 = vsel %vm83, %v689, 0
    %v722 = vsel %vm83, %v691, 0
    %v724 = vsel %vm83, %v693, 0
    %v726 = vsel %vm83, %v695, 0
    %728 = vmatpush.xpose.msra.mxu0 %v726
    %729 = vmatpush.xpose.msra.mxu0 %v724
    %730 = vmatpush.xpose.msra.mxu0 %v722
    %731 = vmatpush.xpose.msra.mxu0 %v720
    %732 = vmatpush.xpose.msra.mxu0 %v718
    %733 = vmatpush.xpose.msra.mxu0 %v716
    %734 = vmatpush.xpose.msra.mxu0 %v714
    %735 = vmatpush.xpose.msra.mxu0 %v712
    %736 = vmatpush.xpose.msra.mxu0 %v710
    %737 = vmatpush.xpose.msra.mxu0 %v708
    %738 = vmatpush.xpose.msra.mxu0 %v706
    %739 = vmatpush.xpose.msra.mxu0 %v704
    %740 = vmatpush.xpose.msra.mxu0 %v702
    %741 = vmatpush.xpose.msra.mxu0 %v700
    %742 = vmatpush.xpose.msra.mxu0 %v698
    %743 = vmatpush.xpose.msra.mxu0 %v696
    %744 = vmatmul.f32.gmra.mxu0 %v589
    %v745 = vpop.f32.mrf.mxu0
    %v746 = vadd.f32 %v587, %v745
    %747 = vdwg.mxu0
    %748 = vst.msk [vmem:[#allocation4 + $0x1] sm:$0x1] %vm662, %v746
    // Predicated region
    $region30: #{tpu_custom_call.1} parent=1 // pred_check
      _
    $region31: #{tpu_custom_call.1} parent=1 // pred_check_branch
      %750 = sbr.rel (0) target = $region33
    $region32: #{tpu_custom_call.1} parent=1 // pred_region
      %752 = vsyncadd [#allocation5], 0
      %s754 = sshll.u32 [#allocation4], 4
      %s755 = int_to_ptr.vmem [resolvable:$true] %s754
      %s756 = sshll.u32 %s7, 4
      %s757 = int_to_ptr.hbm [resolvable:$true] %s756
      %759 = dma.vmem_to_hbm [thread:$0]  %s755, 32, %s757, [#allocation5]
    $region33: #{tpu_custom_call.1} parent=1 // pred_fallthru
      _
    // Predicated region
    $region34: #{tpu_custom_call.1} parent=1 // pred_check
      _
    $region35: #{tpu_custom_call.1} parent=1 // pred_check_branch
      %761 = sbr.rel (0) target = $region37
    $region36: #{tpu_custom_call.1} parent=1 // pred_region
      %763 = dma.done [#allocation5], 32
    $region37: #{tpu_custom_call.1} parent=1 // pred_fallthru
      _
    %764 = vsyncpa [#allocation5], 1

</llo_original>
